<compile_context>
chip_gen: v5e
topology: v5e:2x2
jax: 0.10.0
libtpu: 0.0.40
codegen_flags: <defaults>
</compile_context>

<pallas_src>
import jax
import jax.numpy as jnp
import numpy as np
from jax import lax
from jax.experimental import pallas as pl
from jax.experimental.pallas import tpu as pltpu


def _ctc_argmax_kernel(e_ref, idx_ref):
    """(tb, C) emission block -> (1, tb) argmax over classes (first-occurrence ties)."""
    tb, n_cls = e_ref.shape
    e = e_ref[...]                                               # (tb, C) f32

    # (tb, C) -> (C, tb) flip on the idle MXU: eye @ e^T.  Multiplying by an
    # exact 0/1 matrix at HIGHEST precision keeps f32 values (effectively)
    # bit-exact, so argmax ties behave like the reference.  Assumes finite
    # logits (0 * inf would poison only that time step).
    rows = lax.broadcasted_iota(jnp.int32, (n_cls, n_cls), 0)
    cols = lax.broadcasted_iota(jnp.int32, (n_cls, n_cls), 1)
    eye = (rows == cols).astype(e.dtype)
    e_t = lax.dot_general(eye, e, (((1,), (1,)), ((), ())),
                          precision=lax.Precision.HIGHEST,
                          preferred_element_type=jnp.float32)    # (C, tb)

    # argmax over the class (sublane) axis, first-occurrence tie-break:
    # max -> compare -> min-of-class-id (a fused variadic argmax does not
    # lower reliably in Mosaic).  class_id is a (C, 1) iota broadcast along
    # lanes, not a full (C, tb) temp.
    max_val = jnp.max(e_t, axis=0, keepdims=True)                # (1, tb)
    class_id = lax.broadcasted_iota(jnp.int32, (n_cls, 1), 0)    # (C, 1)
    idx = jnp.min(jnp.where(e_t == max_val, class_id, n_cls),
                  axis=0, keepdims=True)                         # (1, tb)

    # Clamp so a pathological all-NaN column can never index past the labels.
    idx_ref[...] = jnp.minimum(idx, n_cls - 1).astype(jnp.int32)


def ctc_greedy_argmax(emission: jax.Array, *, block_t: int = 8192) -> jax.Array:
    """emission: (T, C) float -> (T,) int32 argmax over the class dim (on TPU)."""
    t_total, n_cls = emission.shape

    if t_total <= block_t:
        tb = t_total                                # single full-extent block
    else:
        tb = max(128, (block_t // 128) * 128)       # lane-aligned time tiles

    out = pl.pallas_call(
        _ctc_argmax_kernel,
        out_shape=jax.ShapeDtypeStruct((1, t_total), jnp.int32),
        grid=(pl.cdiv(t_total, tb),),
        in_specs=[pl.BlockSpec((tb, n_cls), lambda i: (i, 0))],
        out_specs=pl.BlockSpec((1, tb), lambda i: (0, i)),
        compiler_params=pltpu.CompilerParams(
            dimension_semantics=("parallel",),      # carry-free: shards across TCs on v7x
            vmem_limit_bytes=32 * 1024 * 1024),
    )(emission)
    return out[0]


class GreedyCTCDecoderPallas:
    """Mirror of the PyTorch GreedyCTCDecoder; argmax runs in Pallas on TPU."""

    def __init__(self, labels, blank=0):
        self.labels = labels
        self.blank = blank

    def __call__(self, emission: jax.Array) -> str:
        idx = np.asarray(jax.device_get(ctc_greedy_argmax(emission)))
        if idx.size == 0:
            return ""
        # TODO(synk): unique_consecutive / blank drop / label ' '.join are done
        # host-side on the (already transferred) index vector - the string
        # construction has no tensor equivalent, and keeping them off-device
        # keeps the kernel grid carry-free and fully parallel.
        keep = np.ones(idx.shape, dtype=bool)
        keep[1:] = idx[1:] != idx[:-1]              # unique_consecutive
        kept = idx[keep]
        kept = kept[kept != self.blank]             # drop blank
        joined = ' '.join(self.labels[int(i)] for i in kept)
        return joined.replace('|', ' ').strip()


def _reference_indices(emission: np.ndarray, blank=0):
    """Pure-numpy argmax + unique_consecutive + blank drop."""
    indices = np.argmax(emission, axis=-1)
    uniq = [int(indices[0])] + [int(indices[i]) for i in range(1, len(indices))
                                if indices[i] != indices[i - 1]]
    return [i for i in uniq if i != blank]


def _reference_decode(emission: np.ndarray, labels, blank=0) -> str:
    kept = _reference_indices(emission, blank=blank)
    joined = ' '.join(labels[i] for i in kept)
    return joined.replace('|', ' ').strip()


if __name__ == "__main__":
    # 32 labels: blank at index 0, letters, '|' as word separator, punctuation.
    labels = ['-'] + list("abcdefghijklmnopqrstuvwxyz") + ['|', "'", '.', ',', '?']
    assert len(labels) == 32

    key = jax.random.PRNGKey(0)
    k1, k2 = jax.random.split(key)

    decoder = GreedyCTCDecoderPallas(labels, blank=0)

    # Small case (matches the module's toy usage): (T=8, C=32), single block.
    T, C = 8, 32
    emission = jax.random.normal(k1, (T, C), dtype=jnp.float32)
    idx = ctc_greedy_argmax(emission)
    jax.block_until_ready(idx)
    ref_idx = np.argmax(np.asarray(emission), axis=-1)
    assert np.asarray(idx).tolist() == ref_idx.tolist(), "argmax mismatch (small)"
    decoded = decoder(emission)
    expected = _reference_decode(np.asarray(emission), labels, blank=0)
    assert decoded == expected, f"mismatch: {decoded!r} vs {expected!r}"

    # Multi-block case: exercises the parallel time grid and the clipped
    # (non-dividing) final block.
    T2 = 500
    emission2 = jax.random.normal(k2, (T2, C), dtype=jnp.float32)
    idx2 = np.asarray(jax.device_get(ctc_greedy_argmax(emission2, block_t=128)))
    ref_idx2 = np.argmax(np.asarray(emission2), axis=-1)
    assert idx2.tolist() == ref_idx2.tolist(), "multi-block argmax mismatch"
    decoded2 = decoder(emission2)  # default block_t -> single full-extent block path
    expected2 = _reference_decode(np.asarray(emission2), labels, blank=0)
    assert decoded2 == expected2, "multi-block decode mismatch"

    print("KERNEL_OK")
</pallas_src>

<mosaic_0001>
module attributes {stable_mosaic.version = 11 : i64} {
  func.func @_ctc_argmax_kernel(%arg0: i32, %arg1: memref<8x32xf32, #tpu.memory_space<vmem>>, %arg2: memref<1x8xi32, #tpu.memory_space<vmem>>) attributes {dimension_semantics = [#tpu.dimension_semantics<parallel>], iteration_bounds = array<i64: 1>, scalar_prefetch = 0 : i64, scratch_operands = 0 : i64, tpu.core_type = #tpu.core_type<tc>, window_params = [{transform_indices = @transform_0, window_bounds = array<i64: 8, 32>}, {transform_indices = @transform_1, window_bounds = array<i64: 1, 8>}]} {
    %c0 = arith.constant 0 : index
    %c0_0 = arith.constant 0 : index
    %0 = vector.load %arg1[%c0, %c0_0] : memref<8x32xf32, #tpu.memory_space<vmem>>, vector<8x32xf32>
    %1 = tpu.iota {dimensions = array<i32: 0>} : vector<32x32xi32>
    %2 = tpu.iota {dimensions = array<i32: 1>} : vector<32x32xi32>
    %3 = arith.cmpi eq, %1, %2 : vector<32x32xi32>
    %4 = arith.extui %3 : vector<32x32xi1> to vector<32x32xi32>
    %5 = arith.sitofp %4 : vector<32x32xi32> to vector<32x32xf32>
    %cst = arith.constant dense<0.000000e+00> : vector<32x8xf32>
    %6 = tpu.matmul %5, %0, %cst {dimension_numbers = #tpu.dot_dimension_numbers<[1], [1], [0], [0], [0, 0, 1, 0], [], []>, precision = #tpu.contract_precision<fp32>} : vector<32x32xf32>, vector<8x32xf32>, vector<32x8xf32> -> vector<32x8xf32>
    %cst_1 = arith.constant dense<0xFF800000> : vector<8xf32>
    %7 = vector.multi_reduction <maximumf>, %6, %cst_1 [0] : vector<32x8xf32> to vector<8xf32>
    %8 = vector.shape_cast %7 : vector<8xf32> to vector<1x8xf32>
    %9 = tpu.iota {dimensions = array<i32: 0>} : vector<32x1xi32>
    %10 = vector.broadcast %8 : vector<1x8xf32> to vector<32x8xf32>
    %11 = arith.cmpf oeq, %6, %10 : vector<32x8xf32>
    %c32_i32 = arith.constant 32 : i32
    %12 = vector.shape_cast %9 : vector<32x1xi32> to vector<32x1xi32>
    %13 = vector.broadcast %12 : vector<32x1xi32> to vector<32x8xi32>
    %14 = vector.broadcast %c32_i32 : i32 to vector<32x8xi32>
    %15 = arith.select %11, %13, %14 : vector<32x8xi1>, vector<32x8xi32>
    %cst_2 = arith.constant dense<2147483647> : vector<8xi32>
    %16 = vector.multi_reduction <minsi>, %15, %cst_2 [0] : vector<32x8xi32> to vector<8xi32>
    %17 = vector.shape_cast %16 : vector<8xi32> to vector<1x8xi32>
    %c31_i32 = arith.constant 31 : i32
    %18 = vector.broadcast %c31_i32 : i32 to vector<1x8xi32>
    %19 = arith.minsi %17, %18 : vector<1x8xi32>
    %c0_3 = arith.constant 0 : index
    %c0_4 = arith.constant 0 : index
    %20 = vector.load %arg2[%c0_3, %c0_4] : memref<1x8xi32, #tpu.memory_space<vmem>>, vector<1x8xi32>
    tpu.vector_store %arg2[%c0_3, %c0_4], %19 {strides = array<i32>} : memref<1x8xi32, #tpu.memory_space<vmem>>, vector<1x8xi32>,
    return
  }
  func.func @transform_0(%arg0: i32) -> (i32, i32) {
    %c0_i32 = arith.constant 0 : i32
    %c0_i32_0 = arith.constant 0 : i32
    return %arg0, %c0_i32 : i32, i32
  }
  func.func @transform_1(%arg0: i32) -> (i32, i32) {
    %c0_i32 = arith.constant 0 : i32
    %c0_i32_0 = arith.constant 0 : i32
    return %c0_i32, %arg0 : i32, i32
  }
}

</mosaic_0001>

<llo_original>
// kernel: tpu_custom_call.1
$region0: #{tpu_custom_call.1}
  #allocation0 [shape = 'u32[]', space=smem, size = 0x4, offset = 0x4, fixed_abs, tag = 'smem constant byte address 0x4 - core index']
  #allocation1 [shape = 'u32[72,128]{1,0:T(1,128)}', space=vmem, size = 0x9000, scoped, tag = 'internal scratch']
  %s0 = inlined_call_operand.hbm [shape: f32[8,32], index: 0, kind: input, shape index: {}]
  %s1 = inlined_call_operand.hbm [shape: s32[1,8], index: 1, kind: output, shape index: {}]
  %s2 = sld [smem:[#allocation0]]
  $region18: #{tpu_custom_call.1} parent=0
    _
  %s4 = ssub.s32 1, %s2
  %s5 = scalar_select 0, %s4, %s2
  $region1: #{tpu_custom_call.1} parent=0
    #allocation2 [shape = 'u8[4096]{0}', space=vmem, size = 0x1000, scoped, tag = 'input window, operand 0, single buffered']
    #allocation3 [shape = 's32[1]{0}', space=sflag, size = 0x4, scoped, tag = 'scoped memory for tpu_custom_call.1']
    #allocation4 [shape = 's32[1]{0}', space=sflag, size = 0x4, scoped, tag = 'scoped memory for tpu_custom_call.1']
    #allocation5 [shape = 'u8[512]{0}', space=vmem, size = 0x400, scoped, tag = 'output window, operand 0, single buffered']
    %6 = vsyncpa [#allocation3], 0
    %7 = vsyncpa [#allocation4], 0
    // Predicated region
    $region2: #{tpu_custom_call.1} parent=1 // pred_check
      _
    $region3: #{tpu_custom_call.1} parent=1 // pred_check_branch
      %9 = sbr.rel (0) target = $region5
    $region4: #{tpu_custom_call.1} parent=1 // pred_region
      %11 = vsyncadd [#allocation3], 0
      %s13 = sshll.u32 %s0, 4
      %s14 = int_to_ptr.hbm [resolvable:$true] %s13
      %s15 = sshll.u32 [#allocation2], 4
      %s16 = int_to_ptr.vmem [resolvable:$true] %s15
      %18 = dma.hbm_to_vmem [thread:$0]  %s14, 128, %s16, [#allocation3]
    $region5: #{tpu_custom_call.1} parent=1 // pred_fallthru
      _
    // Predicated region
    $region6: #{tpu_custom_call.1} parent=1 // pred_check
      _
    $region7: #{tpu_custom_call.1} parent=1 // pred_check_branch
      %20 = sbr.rel (0) target = $region9
    $region8: #{tpu_custom_call.1} parent=1 // pred_region
      %22 = dma.done [#allocation3], 128
    $region9: #{tpu_custom_call.1} parent=1 // pred_fallthru
      _
    %v23 = vld [vmem:[#allocation2] sm:$0xff]
    %v24 = vlaneseq
    %v25 = vshrl.u32 %v24, 7
    %v26 = vadd.s32 %v25, 8
    %v27 = vadd.s32 %v25, 16
    %v28 = vadd.s32 %v25, 24
    %v29 = vlaneseq
    %v30 = vand.u32 %v29, 127
    %vm31 = vcmp.eq.s32.totalorder %v25, %v30
    %vm32 = vcmp.eq.s32.totalorder %v26, %v30
    %vm33 = vcmp.eq.s32.totalorder %v27, %v30
    %vm34 = vcmp.eq.s32.totalorder %v28, %v30
    %v35 = vsel %vm31, 1, 0
    %v36 = vsel %vm32, 1, 0
    %v37 = vsel %vm33, 1, 0
    %v38 = vsel %vm34, 1, 0
    %v39 = vcvt.s32.f32 %v35
    %v40 = vcvt.s32.f32 %v36
    %v41 = vcvt.s32.f32 %v37
    %v42 = vcvt.s32.f32 %v38
    %vm43 = vcmask 261120
    %v45 = vsel %vm43, %v39, 0
    %v48 = vsel %vm43, %v40, 0
    %v51 = vsel %vm43, %v41, 0
    %v54 = vsel %vm43, %v42, 0
    %v57 = vsel %vm43, %v23, 0
    %59 = vmatpush.xpose.msra.mxu0 0.0
    %60 = vmatpush.xpose.msra.mxu0 0.0
    %61 = vmatpush.xpose.msra.mxu0 0.0
    %62 = vmatpush.xpose.msra.mxu0 0.0
    %63 = vmatpush.xpose.msra.mxu0 0.0
    %64 = vmatpush.xpose.msra.mxu0 0.0
    %65 = vmatpush.xpose.msra.mxu0 0.0
    %66 = vmatpush.xpose.msra.mxu0 0.0
    %67 = vmatpush.xpose.msra.mxu0 0.0
    %68 = vmatpush.xpose.msra.mxu0 0.0
    %69 = vmatpush.xpose.msra.mxu0 0.0
    %70 = vmatpush.xpose.msra.mxu0 0.0
    %71 = vmatpush.xpose.msra.mxu0 0.0
    %72 = vmatpush.xpose.msra.mxu0 0.0
    %73 = vmatpush.xpose.msra.mxu0 0.0
    %v74 = vand.u32 %v57, 4294901760
    %75 = vmatpush.xpose.msra.mxu0 %v74
    %v76 = vand.u32 %v45, 4294901760
    %v77 = vsub.f32 %v45, %v76
    %v78 = vand.u32 %v77, 4294901760
    %v79 = vsub.f32 %v77, %v78
    %v80 = vand.u32 %v79, 4294901760
    %81 = vmatmul.f32.gmra.mxu0 %v80
    %v82 = vpop.f32.mrf.mxu0
    %v83 = vadd.f32 0.0, %v82
    %v84 = vand.u32 %v48, 4294901760
    %v85 = vsub.f32 %v48, %v84
    %v86 = vand.u32 %v85, 4294901760
    %v87 = vsub.f32 %v85, %v86
    %v88 = vand.u32 %v87, 4294901760
    %89 = vmatmul.f32.gmra.mxu0 %v88
    %v90 = vpop.f32.mrf.mxu0
    %v91 = vadd.f32 0.0, %v90
    %v92 = vand.u32 %v51, 4294901760
    %v93 = vsub.f32 %v51, %v92
    %v94 = vand.u32 %v93, 4294901760
    %v95 = vsub.f32 %v93, %v94
    %v96 = vand.u32 %v95, 4294901760
    %97 = vmatmul.f32.gmra.mxu0 %v96
    %v98 = vpop.f32.mrf.mxu0
    %v99 = vadd.f32 0.0, %v98
    %v100 = vand.u32 %v54, 4294901760
    %v101 = vsub.f32 %v54, %v100
    %v102 = vand.u32 %v101, 4294901760
    %v103 = vsub.f32 %v101, %v102
    %v104 = vand.u32 %v103, 4294901760
    %105 = vmatmul.f32.gmra.mxu0 %v104
    %v106 = vpop.f32.mrf.mxu0
    %v107 = vadd.f32 0.0, %v106
    %108 = vdwg.mxu0
    %109 = vmatpush.xpose.msra.mxu0 0.0
    %110 = vmatpush.xpose.msra.mxu0 0.0
    %111 = vmatpush.xpose.msra.mxu0 0.0
    %112 = vmatpush.xpose.msra.mxu0 0.0
    %113 = vmatpush.xpose.msra.mxu0 0.0
    %114 = vmatpush.xpose.msra.mxu0 0.0
    %115 = vmatpush.xpose.msra.mxu0 0.0
    %116 = vmatpush.xpose.msra.mxu0 0.0
    %117 = vmatpush.xpose.msra.mxu0 0.0
    %118 = vmatpush.xpose.msra.mxu0 0.0
    %119 = vmatpush.xpose.msra.mxu0 0.0
    %120 = vmatpush.xpose.msra.mxu0 0.0
    %121 = vmatpush.xpose.msra.mxu0 0.0
    %122 = vmatpush.xpose.msra.mxu0 0.0
    %123 = vmatpush.xpose.msra.mxu0 0.0
    %v124 = vand.u32 %v57, 4294901760
    %v125 = vsub.f32 %v57, %v124
    %v126 = vand.u32 %v125, 4294901760
    %v127 = vsub.f32 %v125, %v126
    %v128 = vand.u32 %v127, 4294901760
    %129 = vmatpush.xpose.msra.mxu0 %v128
    %v130 = vand.u32 %v45, 4294901760
    %131 = vmatmul.f32.gmra.mxu0 %v130
    %v132 = vpop.f32.mrf.mxu0
    %v133 = vadd.f32 %v83, %v132
    %v134 = vand.u32 %v48, 4294901760
    %135 = vmatmul.f32.gmra.mxu0 %v134
    %v136 = vpop.f32.mrf.mxu0
    %v137 = vadd.f32 %v91, %v136
    %v138 = vand.u32 %v51, 4294901760
    %139 = vmatmul.f32.gmra.mxu0 %v138
    %v140 = vpop.f32.mrf.mxu0
    %v141 = vadd.f32 %v99, %v140
    %v142 = vand.u32 %v54, 4294901760
    %143 = vmatmul.f32.gmra.mxu0 %v142
    %v144 = vpop.f32.mrf.mxu0
    %v145 = vadd.f32 %v107, %v144
    %146 = vdwg.mxu0
    %147 = vmatpush.xpose.msra.mxu0 0.0
    %148 = vmatpush.xpose.msra.mxu0 0.0
    %149 = vmatpush.xpose.msra.mxu0 0.0
    %150 = vmatpush.xpose.msra.mxu0 0.0
    %151 = vmatpush.xpose.msra.mxu0 0.0
    %152 = vmatpush.xpose.msra.mxu0 0.0
    %153 = vmatpush.xpose.msra.mxu0 0.0
    %154 = vmatpush.xpose.msra.mxu0 0.0
    %155 = vmatpush.xpose.msra.mxu0 0.0
    %156 = vmatpush.xpose.msra.mxu0 0.0
    %157 = vmatpush.xpose.msra.mxu0 0.0
    %158 = vmatpush.xpose.msra.mxu0 0.0
    %159 = vmatpush.xpose.msra.mxu0 0.0
    %160 = vmatpush.xpose.msra.mxu0 0.0
    %161 = vmatpush.xpose.msra.mxu0 0.0
    %v162 = vand.u32 %v57, 4294901760
    %v163 = vsub.f32 %v57, %v162
    %164 = vmatpush.xpose.msra.mxu0 %v163
    %v165 = vand.u32 %v45, 4294901760
    %v166 = vsub.f32 %v45, %v165
    %167 = vmatmul.f32.gmra.mxu0 %v166
    %v168 = vpop.f32.mrf.mxu0
    %v169 = vadd.f32 %v133, %v168
    %v170 = vand.u32 %v48, 4294901760
    %v171 = vsub.f32 %v48, %v170
    %172 = vmatmul.f32.gmra.mxu0 %v171
    %v173 = vpop.f32.mrf.mxu0
    %v174 = vadd.f32 %v137, %v173
    %v175 = vand.u32 %v51, 4294901760
    %v176 = vsub.f32 %v51, %v175
    %177 = vmatmul.f32.gmra.mxu0 %v176
    %v178 = vpop.f32.mrf.mxu0
    %v179 = vadd.f32 %v141, %v178
    %v180 = vand.u32 %v54, 4294901760
    %v181 = vsub.f32 %v54, %v180
    %182 = vmatmul.f32.gmra.mxu0 %v181
    %v183 = vpop.f32.mrf.mxu0
    %v184 = vadd.f32 %v145, %v183
    %185 = vdwg.mxu0
    %186 = vmatpush.xpose.msra.mxu0 0.0
    %187 = vmatpush.xpose.msra.mxu0 0.0
    %188 = vmatpush.xpose.msra.mxu0 0.0
    %189 = vmatpush.xpose.msra.mxu0 0.0
    %190 = vmatpush.xpose.msra.mxu0 0.0
    %191 = vmatpush.xpose.msra.mxu0 0.0
    %192 = vmatpush.xpose.msra.mxu0 0.0
    %193 = vmatpush.xpose.msra.mxu0 0.0
    %194 = vmatpush.xpose.msra.mxu0 0.0
    %195 = vmatpush.xpose.msra.mxu0 0.0
    %196 = vmatpush.xpose.msra.mxu0 0.0
    %197 = vmatpush.xpose.msra.mxu0 0.0
    %198 = vmatpush.xpose.msra.mxu0 0.0
    %199 = vmatpush.xpose.msra.mxu0 0.0
    %200 = vmatpush.xpose.msra.mxu0 0.0
    %v201 = vand.u32 %v57, 4294901760
    %202 = vmatpush.xpose.msra.mxu0 %v201
    %v203 = vand.u32 %v45, 4294901760
    %v204 = vsub.f32 %v45, %v203
    %v205 = vand.u32 %v204, 4294901760
    %206 = vmatmul.f32.gmra.mxu0 %v205
    %v207 = vpop.f32.mrf.mxu0
    %v208 = vadd.f32 %v169, %v207
    %v209 = vand.u32 %v48, 4294901760
    %v210 = vsub.f32 %v48, %v209
    %v211 = vand.u32 %v210, 4294901760
    %212 = vmatmul.f32.gmra.mxu0 %v211
    %v213 = vpop.f32.mrf.mxu0
    %v214 = vadd.f32 %v174, %v213
    %v215 = vand.u32 %v51, 4294901760
    %v216 = vsub.f32 %v51, %v215
    %v217 = vand.u32 %v216, 4294901760
    %218 = vmatmul.f32.gmra.mxu0 %v217
    %v219 = vpop.f32.mrf.mxu0
    %v220 = vadd.f32 %v179, %v219
    %v221 = vand.u32 %v54, 4294901760
    %v222 = vsub.f32 %v54, %v221
    %v223 = vand.u32 %v222, 4294901760
    %224 = vmatmul.f32.gmra.mxu0 %v223
    %v225 = vpop.f32.mrf.mxu0
    %v226 = vadd.f32 %v184, %v225
    %227 = vdwg.mxu0
    %228 = vmatpush.xpose.msra.mxu0 0.0
    %229 = vmatpush.xpose.msra.mxu0 0.0
    %230 = vmatpush.xpose.msra.mxu0 0.0
    %231 = vmatpush.xpose.msra.mxu0 0.0
    %232 = vmatpush.xpose.msra.mxu0 0.0
    %233 = vmatpush.xpose.msra.mxu0 0.0
    %234 = vmatpush.xpose.msra.mxu0 0.0
    %235 = vmatpush.xpose.msra.mxu0 0.0
    %236 = vmatpush.xpose.msra.mxu0 0.0
    %237 = vmatpush.xpose.msra.mxu0 0.0
    %238 = vmatpush.xpose.msra.mxu0 0.0
    %239 = vmatpush.xpose.msra.mxu0 0.0
    %240 = vmatpush.xpose.msra.mxu0 0.0
    %241 = vmatpush.xpose.msra.mxu0 0.0
    %242 = vmatpush.xpose.msra.mxu0 0.0
    %v243 = vand.u32 %v57, 4294901760
    %v244 = vsub.f32 %v57, %v243
    %v245 = vand.u32 %v244, 4294901760
    %246 = vmatpush.xpose.msra.mxu0 %v245
    %v247 = vand.u32 %v45, 4294901760
    %248 = vmatmul.f32.gmra.mxu0 %v247
    %v249 = vpop.f32.mrf.mxu0
    %v250 = vadd.f32 %v208, %v249
    %v251 = vand.u32 %v48, 4294901760
    %252 = vmatmul.f32.gmra.mxu0 %v251
    %v253 = vpop.f32.mrf.mxu0
    %v254 = vadd.f32 %v214, %v253
    %v255 = vand.u32 %v51, 4294901760
    %256 = vmatmul.f32.gmra.mxu0 %v255
    %v257 = vpop.f32.mrf.mxu0
    %v258 = vadd.f32 %v220, %v257
    %v259 = vand.u32 %v54, 4294901760
    %260 = vmatmul.f32.gmra.mxu0 %v259
    %v261 = vpop.f32.mrf.mxu0
    %v262 = vadd.f32 %v226, %v261
    %263 = vdwg.mxu0
    %264 = vmatpush.xpose.msra.mxu0 0.0
    %265 = vmatpush.xpose.msra.mxu0 0.0
    %266 = vmatpush.xpose.msra.mxu0 0.0
    %267 = vmatpush.xpose.msra.mxu0 0.0
    %268 = vmatpush.xpose.msra.mxu0 0.0
    %269 = vmatpush.xpose.msra.mxu0 0.0
    %270 = vmatpush.xpose.msra.mxu0 0.0
    %271 = vmatpush.xpose.msra.mxu0 0.0
    %272 = vmatpush.xpose.msra.mxu0 0.0
    %273 = vmatpush.xpose.msra.mxu0 0.0
    %274 = vmatpush.xpose.msra.mxu0 0.0
    %275 = vmatpush.xpose.msra.mxu0 0.0
    %276 = vmatpush.xpose.msra.mxu0 0.0
    %277 = vmatpush.xpose.msra.mxu0 0.0
    %278 = vmatpush.xpose.msra.mxu0 0.0
    %v279 = vand.u32 %v57, 4294901760
    %280 = vmatpush.xpose.msra.mxu0 %v279
    %v281 = vand.u32 %v45, 4294901760
    %282 = vmatmul.f32.gmra.mxu0 %v281
    %v283 = vpop.f32.mrf.mxu0
    %v284 = vadd.f32 %v250, %v283
    %v285 = vand.u32 %v48, 4294901760
    %286 = vmatmul.f32.gmra.mxu0 %v285
    %v287 = vpop.f32.mrf.mxu0
    %v288 = vadd.f32 %v254, %v287
    %v289 = vand.u32 %v51, 4294901760
    %290 = vmatmul.f32.gmra.mxu0 %v289
    %v291 = vpop.f32.mrf.mxu0
    %v292 = vadd.f32 %v258, %v291
    %v293 = vand.u32 %v54, 4294901760
    %294 = vmatmul.f32.gmra.mxu0 %v293
    %v295 = vpop.f32.mrf.mxu0
    %v296 = vadd.f32 %v262, %v295
    %297 = vdwg.mxu0
    %vm298 = vcmask 64512
    %v299 = vsel %vm298, %v284, -inf
    %v300 = vsel %vm298, %v288, -inf
    %v301 = vsel %vm298, %v292, -inf
    %v302 = vsel %vm298, %v296, -inf
    %v303 = vmax.f32 %v299, %v300
    %v304 = vmax.f32 %v301, %v302
    %v305 = vmax.f32 %v303, %v304
    %v306 = vrot.slane %v305, 4
    %v307 = vmax.f32 %v305, %v306
    %v308 = vrot.slane %v307, 2
    %v309 = vmax.f32 %v307, %v308
    %v310 = vrot.slane %v309, 1
    %v311 = vmax.f32 %v309, %v310
    %vm312 = vcmp.eq.f32.partialorder %v284, %v311
    %vm313 = vcmp.eq.f32.partialorder %v288, %v311
    %vm314 = vcmp.eq.f32.partialorder %v292, %v311
    %vm315 = vcmp.eq.f32.partialorder %v296, %v311
    %v316 = vsel %vm312, %v25, 32
    %v317 = vsel %vm313, %v26, 32
    %v318 = vsel %vm314, %v27, 32
    %v319 = vsel %vm315, %v28, 32
    %v320 = vsel %vm298, %v316, 2147483647
    %v321 = vsel %vm298, %v317, 2147483647
    %v322 = vsel %vm298, %v318, 2147483647
    %v323 = vsel %vm298, %v319, 2147483647
    %vm324 = vcmp.lt.s32.totalorder %v320, %v321
    %v325 = vsel %vm324, %v320, %v321
    %vm326 = vcmp.lt.s32.totalorder %v322, %v323
    %v327 = vsel %vm326, %v322, %v323
    %vm328 = vcmp.lt.s32.totalorder %v325, %v327
    %v329 = vsel %vm328, %v325, %v327
    %v330 = vrot.slane %v329, 4
    %vm331 = vcmp.lt.s32.totalorder %v329, %v330
    %v332 = vsel %vm331, %v329, %v330
    %v333 = vrot.slane %v332, 2
    %vm334 = vcmp.lt.s32.totalorder %v332, %v333
    %v335 = vsel %vm334, %v332, %v333
    %v336 = vrot.slane %v335, 1
    %vm337 = vcmp.lt.s32.totalorder %v335, %v336
    %v338 = vsel %vm337, %v335, %v336
    %vm339 = vcmp.lt.s32.totalorder %v338, 31
    %v340 = vsel %vm339, %v338, 31
    %vm341 = vcmask 57344
    %342 = vst.msk [vmem:[#allocation5] sm:$0x1] %vm341, %v340
    // Predicated region
    $region10: #{tpu_custom_call.1} parent=1 // pred_check
      _
    $region11: #{tpu_custom_call.1} parent=1 // pred_check_branch
      %344 = sbr.rel (0) target = $region13
    $region12: #{tpu_custom_call.1} parent=1 // pred_region
      %346 = vsyncadd [#allocation4], 0
      %s348 = sshll.u32 [#allocation5], 4
      %s349 = int_to_ptr.vmem [resolvable:$true] %s348
      %s350 = sshll.u32 %s1, 4
      %s351 = int_to_ptr.hbm [resolvable:$true] %s350
      %353 = dma.vmem_to_hbm [thread:$0]  %s349, 16, %s351, [#allocation4]
    $region13: #{tpu_custom_call.1} parent=1 // pred_fallthru
      _
    // Predicated region
    $region14: #{tpu_custom_call.1} parent=1 // pred_check
      _
    $region15: #{tpu_custom_call.1} parent=1 // pred_check_branch
      %355 = sbr.rel (0) target = $region17
    $region16: #{tpu_custom_call.1} parent=1 // pred_region
      %357 = dma.done [#allocation4], 16
    $region17: #{tpu_custom_call.1} parent=1 // pred_fallthru
      _
    %358 = vsyncpa [#allocation3], 1
    %359 = vsyncpa [#allocation4], 1

</llo_original>
